<compile_context>
chip_gen: v7x
topology: tpu7x:2x2x1
jax: 0.10.0
libtpu: 0.0.40
codegen_flags: <defaults>
</compile_context>

<pallas_src>
import functools

import jax
import jax.numpy as jnp
from jax.experimental import pallas as pl
from jax.experimental.pallas import tpu as pltpu

LANE = 128
SUBLANE = 8


def _round_up(x, m):
    return ((x + m - 1) // m) * m


def _pad_2d(a, rows, cols, dtype):
    a = a.astype(dtype)
    return jnp.pad(a, ((0, rows - a.shape[0]), (0, cols - a.shape[1])))


def genet_kernel(h_ref,
                 w_emb_ref, b_emb_ref,
                 w1_ref, b1_ref,
                 w2_ref, b2_ref,
                 wr1_ref, br1_ref,
                 wr2_ref, br2_ref,
                 wr3_ref, br3_ref,
                 out_ref,
                 *, tile_b, n_nodes, inv_n):
    # ---------------- encoder (MLPNet): 3 x (Linear + ReLU) over node rows -------
    x = h_ref[...]                                                    # bf16 [TB*N, IN_P]
    x = jnp.dot(x, w_emb_ref[...],
                preferred_element_type=jnp.float32) + b_emb_ref[...]
    x = jnp.maximum(x, 0.0)                                           # f32
    x = jnp.dot(x.astype(jnp.bfloat16), w1_ref[...],
                preferred_element_type=jnp.float32) + b1_ref[...]
    x = jnp.maximum(x, 0.0)
    x = jnp.dot(x.astype(jnp.bfloat16), w2_ref[...],
                preferred_element_type=jnp.float32) + b2_ref[...]
    x = jnp.maximum(x, 0.0)                                           # f32 [TB*N, H_P]

    # ------------- mean readout over each graph's nodes (no pool matrix) ---------
    hid_p = x.shape[-1]
    hg = x.reshape(tile_b, n_nodes, hid_p).sum(axis=1) * inv_n        # f32 [TB, H_P]

    # ---------------- decoder (MLPReadout) ----------------
    y = jnp.dot(hg.astype(jnp.bfloat16), wr1_ref[...],
                preferred_element_type=jnp.float32) + br1_ref[...]
    y = jnp.maximum(y, 0.0)
    y = jnp.dot(y.astype(jnp.bfloat16), wr2_ref[...],
                preferred_element_type=jnp.float32) + br2_ref[...]
    y = jnp.maximum(y, 0.0)
    y = jnp.dot(y.astype(jnp.bfloat16), wr3_ref[...],
                preferred_element_type=jnp.float32) + br3_ref[...]
    out_ref[...] = y                                                  # f32 [TB, C_P]


def genet_forward(h, params, *, target_rows=512):
    """h: [B, N, in_dim] node features of B fixed-size graphs (N nodes each)."""
    B, N, in_dim = h.shape
    hidden = params["w_emb"].shape[1]
    h2 = params["wr1"].shape[1]
    h4 = params["wr2"].shape[1]
    n_classes = params["wr3"].shape[1]

    # lane-dense (multiple-of-128) feature dims; zero-padding is exact (ReLU(0)=0).
    in_p = _round_up(in_dim, LANE)
    hid_p = _round_up(hidden, LANE)
    h2_p = _round_up(h2, LANE)
    h4_p = _round_up(h4, LANE)
    c_p = _round_up(n_classes, LANE)

    # Graph-aligned row tiles: large M keeps the MXU / DMA pipeline fed (K,N are tiny).
    tile_b = max(1, min(B, target_rows // max(N, 1)))
    if tile_b < B:
        tile_b = _round_up(tile_b, SUBLANE)   # satisfies the (8,128) block constraint
    b_pad = _round_up(B, tile_b)
    if tile_b >= b_pad:
        tile_b = b_pad
    grid = b_pad // tile_b
    rows_tile = tile_b * N

    # bf16 storage for activations/weights (MXU + halved DMA), f32 biases.
    h_flat = h.reshape(B * N, in_dim).astype(jnp.bfloat16)
    h_p = jnp.zeros((b_pad * N, in_p), jnp.bfloat16).at[:B * N, :in_dim].set(h_flat)

    def wpad(w, r, c):
        return _pad_2d(w, r, c, jnp.bfloat16)

    def bpad(b, c):
        return _pad_2d(b, 1, c, jnp.float32)

    args = (
        h_p,
        wpad(params["w_emb"], in_p, hid_p), bpad(params["b_emb"], hid_p),
        wpad(params["w1"], hid_p, hid_p), bpad(params["b1"], hid_p),
        wpad(params["w2"], hid_p, hid_p), bpad(params["b2"], hid_p),
        wpad(params["wr1"], hid_p, h2_p), bpad(params["br1"], h2_p),
        wpad(params["wr2"], h2_p, h4_p), bpad(params["br2"], h4_p),
        wpad(params["wr3"], h4_p, c_p), bpad(params["br3"], c_p),
    )

    def pinned(shape):                      # weights/biases stay VMEM-resident
        return pl.BlockSpec(shape, lambda i: (0, 0))

    in_specs = ([pl.BlockSpec((rows_tile, in_p), lambda i: (i, 0))]
                + [pinned(a.shape) for a in args[1:]])

    kernel = functools.partial(genet_kernel, tile_b=tile_b, n_nodes=N, inv_n=1.0 / N)

    out = pl.pallas_call(
        kernel,
        out_shape=jax.ShapeDtypeStruct((b_pad, c_p), jnp.float32),
        grid=(grid,),
        in_specs=in_specs,
        out_specs=pl.BlockSpec((tile_b, c_p), lambda i: (i, 0)),
        compiler_params=pltpu.CompilerParams(
            dimension_semantics=("parallel",),
            vmem_limit_bytes=32 * 1024 * 1024),
    )(*args)
    return out[:B, :n_classes]


def init_params(key, in_dim, hidden, n_classes):
    ks = jax.random.split(key, 6)

    def lin(k, fan_in, fan_out):
        w = jax.random.normal(k, (fan_in, fan_out), jnp.float32) * (1.0 / jnp.sqrt(fan_in))
        b = jnp.zeros((1, fan_out), jnp.float32)
        return w, b

    w_emb, b_emb = lin(ks[0], in_dim, hidden)
    w1, b1 = lin(ks[1], hidden, hidden)
    w2, b2 = lin(ks[2], hidden, hidden)
    wr1, br1 = lin(ks[3], hidden, hidden // 2)
    wr2, br2 = lin(ks[4], hidden // 2, hidden // 4)
    wr3, br3 = lin(ks[5], hidden // 4, n_classes)
    return dict(w_emb=w_emb, b_emb=b_emb, w1=w1, b1=b1, w2=w2, b2=b2,
                wr1=wr1, br1=br1, wr2=wr2, br2=br2, wr3=wr3, br3=br3)


def reference_forward(h_flat, p, n_nodes):
    # Same math path as the kernel: bf16 matmul operands, f32 accumulation/elementwise.
    def mm(x, w):
        return jnp.dot(x.astype(jnp.bfloat16), w.astype(jnp.bfloat16),
                       preferred_element_type=jnp.float32)

    x = jnp.maximum(mm(h_flat, p["w_emb"]) + p["b_emb"], 0.0)
    x = jnp.maximum(mm(x, p["w1"]) + p["b1"], 0.0)
    x = jnp.maximum(mm(x, p["w2"]) + p["b2"], 0.0)
    hg = x.reshape(-1, n_nodes, x.shape[-1]).mean(axis=1)
    y = jnp.maximum(mm(hg, p["wr1"]) + p["br1"], 0.0)
    y = jnp.maximum(mm(y, p["wr2"]) + p["br2"], 0.0)
    return mm(y, p["wr3"]) + p["br3"]


if __name__ == "__main__":
    B, N = 2, 8                      # 2 graphs, 8 nodes each
    in_dim, hidden, n_classes = 16, 32, 4

    key = jax.random.PRNGKey(0)
    k_h, k_p = jax.random.split(key)
    h = jax.random.normal(k_h, (B, N, in_dim), jnp.float32)
    params = init_params(k_p, in_dim, hidden, n_classes)

    out = genet_forward(h, params)
    out = jax.block_until_ready(out)

    ref = reference_forward(h.reshape(B * N, in_dim), params, N)
    assert out.shape == (B, n_classes)
    assert jnp.allclose(out, ref, atol=1e-2, rtol=1e-2), "mismatch vs. reference"

    print("KERNEL_OK")
</pallas_src>

<mosaic_0001>
module attributes {stable_mosaic.version = 11 : i64} {
  func.func @genet_kernel(%arg0: i32, %arg1: memref<16x128xbf16, #tpu.memory_space<vmem>>, %arg2: memref<128x128xbf16, #tpu.memory_space<vmem>>, %arg3: memref<1x128xf32, #tpu.memory_space<vmem>>, %arg4: memref<128x128xbf16, #tpu.memory_space<vmem>>, %arg5: memref<1x128xf32, #tpu.memory_space<vmem>>, %arg6: memref<128x128xbf16, #tpu.memory_space<vmem>>, %arg7: memref<1x128xf32, #tpu.memory_space<vmem>>, %arg8: memref<128x128xbf16, #tpu.memory_space<vmem>>, %arg9: memref<1x128xf32, #tpu.memory_space<vmem>>, %arg10: memref<128x128xbf16, #tpu.memory_space<vmem>>, %arg11: memref<1x128xf32, #tpu.memory_space<vmem>>, %arg12: memref<128x128xbf16, #tpu.memory_space<vmem>>, %arg13: memref<1x128xf32, #tpu.memory_space<vmem>>, %arg14: memref<2x128xf32, #tpu.memory_space<vmem>>) attributes {dimension_semantics = [#tpu.dimension_semantics<parallel>], iteration_bounds = array<i64: 1>, scalar_prefetch = 0 : i64, scratch_operands = 0 : i64, tpu.core_type = #tpu.core_type<tc>, window_params = [{transform_indices = @transform_0, window_bounds = array<i64: 16, 128>}, {pipeline_mode = #tpu.pipeline_mode<synchronous>, transform_indices = @transform_1, window_bounds = array<i64: 128, 128>}, {pipeline_mode = #tpu.pipeline_mode<synchronous>, transform_indices = @transform_2, window_bounds = array<i64: 1, 128>}, {pipeline_mode = #tpu.pipeline_mode<synchronous>, transform_indices = @transform_3, window_bounds = array<i64: 128, 128>}, {pipeline_mode = #tpu.pipeline_mode<synchronous>, transform_indices = @transform_4, window_bounds = array<i64: 1, 128>}, {pipeline_mode = #tpu.pipeline_mode<synchronous>, transform_indices = @transform_5, window_bounds = array<i64: 128, 128>}, {pipeline_mode = #tpu.pipeline_mode<synchronous>, transform_indices = @transform_6, window_bounds = array<i64: 1, 128>}, {pipeline_mode = #tpu.pipeline_mode<synchronous>, transform_indices = @transform_7, window_bounds = array<i64: 128, 128>}, {pipeline_mode = #tpu.pipeline_mode<synchronous>, transform_indices = @transform_8, window_bounds = array<i64: 1, 128>}, {pipeline_mode = #tpu.pipeline_mode<synchronous>, transform_indices = @transform_9, window_bounds = array<i64: 128, 128>}, {pipeline_mode = #tpu.pipeline_mode<synchronous>, transform_indices = @transform_10, window_bounds = array<i64: 1, 128>}, {pipeline_mode = #tpu.pipeline_mode<synchronous>, transform_indices = @transform_11, window_bounds = array<i64: 128, 128>}, {pipeline_mode = #tpu.pipeline_mode<synchronous>, transform_indices = @transform_12, window_bounds = array<i64: 1, 128>}, {transform_indices = @transform_13, window_bounds = array<i64: 2, 128>}]} {
    %c0 = arith.constant 0 : index
    %c0_0 = arith.constant 0 : index
    %0 = vector.load %arg1[%c0, %c0_0] : memref<16x128xbf16, #tpu.memory_space<vmem>>, vector<16x128xbf16>
    %c0_1 = arith.constant 0 : index
    %c0_2 = arith.constant 0 : index
    %1 = vector.load %arg2[%c0_1, %c0_2] : memref<128x128xbf16, #tpu.memory_space<vmem>>, vector<128x128xbf16>
    %cst = arith.constant dense<0.000000e+00> : vector<16x128xf32>
    %2 = tpu.matmul %0, %1, %cst {dimension_numbers = #tpu.dot_dimension_numbers<[1], [0], [0], [1], [0, 0, 1, 1], [], []>} : vector<16x128xbf16>, vector<128x128xbf16>, vector<16x128xf32> -> vector<16x128xf32>
    %c0_3 = arith.constant 0 : index
    %c0_4 = arith.constant 0 : index
    %3 = vector.load %arg3[%c0_3, %c0_4] : memref<1x128xf32, #tpu.memory_space<vmem>>, vector<1x128xf32>
    %4 = vector.broadcast %3 : vector<1x128xf32> to vector<16x128xf32>
    %5 = arith.addf %2, %4 : vector<16x128xf32>
    %cst_5 = arith.constant 0.000000e+00 : f32
    %6 = vector.broadcast %cst_5 : f32 to vector<16x128xf32>
    %7 = arith.maximumf %5, %6 : vector<16x128xf32>
    %8 = arith.truncf %7 : vector<16x128xf32> to vector<16x128xbf16>
    %c0_6 = arith.constant 0 : index
    %c0_7 = arith.constant 0 : index
    %9 = vector.load %arg4[%c0_6, %c0_7] : memref<128x128xbf16, #tpu.memory_space<vmem>>, vector<128x128xbf16>
    %cst_8 = arith.constant dense<0.000000e+00> : vector<16x128xf32>
    %10 = tpu.matmul %8, %9, %cst_8 {dimension_numbers = #tpu.dot_dimension_numbers<[1], [0], [0], [1], [0, 0, 1, 1], [], []>} : vector<16x128xbf16>, vector<128x128xbf16>, vector<16x128xf32> -> vector<16x128xf32>
    %c0_9 = arith.constant 0 : index
    %c0_10 = arith.constant 0 : index
    %11 = vector.load %arg5[%c0_9, %c0_10] : memref<1x128xf32, #tpu.memory_space<vmem>>, vector<1x128xf32>
    %12 = vector.broadcast %11 : vector<1x128xf32> to vector<16x128xf32>
    %13 = arith.addf %10, %12 : vector<16x128xf32>
    %cst_11 = arith.constant 0.000000e+00 : f32
    %14 = vector.broadcast %cst_11 : f32 to vector<16x128xf32>
    %15 = arith.maximumf %13, %14 : vector<16x128xf32>
    %16 = arith.truncf %15 : vector<16x128xf32> to vector<16x128xbf16>
    %c0_12 = arith.constant 0 : index
    %c0_13 = arith.constant 0 : index
    %17 = vector.load %arg6[%c0_12, %c0_13] : memref<128x128xbf16, #tpu.memory_space<vmem>>, vector<128x128xbf16>
    %cst_14 = arith.constant dense<0.000000e+00> : vector<16x128xf32>
    %18 = tpu.matmul %16, %17, %cst_14 {dimension_numbers = #tpu.dot_dimension_numbers<[1], [0], [0], [1], [0, 0, 1, 1], [], []>} : vector<16x128xbf16>, vector<128x128xbf16>, vector<16x128xf32> -> vector<16x128xf32>
    %c0_15 = arith.constant 0 : index
    %c0_16 = arith.constant 0 : index
    %19 = vector.load %arg7[%c0_15, %c0_16] : memref<1x128xf32, #tpu.memory_space<vmem>>, vector<1x128xf32>
    %20 = vector.broadcast %19 : vector<1x128xf32> to vector<16x128xf32>
    %21 = arith.addf %18, %20 : vector<16x128xf32>
    %cst_17 = arith.constant 0.000000e+00 : f32
    %22 = vector.broadcast %cst_17 : f32 to vector<16x128xf32>
    %23 = arith.maximumf %21, %22 : vector<16x128xf32>
    %24 = vector.shape_cast %23 : vector<16x128xf32> to vector<2x8x128xf32>
    %cst_18 = arith.constant dense<0.000000e+00> : vector<2x128xf32>
    %25 = vector.multi_reduction <add>, %24, %cst_18 [1] : vector<2x8x128xf32> to vector<2x128xf32>
    %cst_19 = arith.constant 1.250000e-01 : f32
    %26 = vector.broadcast %cst_19 : f32 to vector<2x128xf32>
    %27 = arith.mulf %25, %26 : vector<2x128xf32>
    %28 = arith.truncf %27 : vector<2x128xf32> to vector<2x128xbf16>
    %c0_20 = arith.constant 0 : index
    %c0_21 = arith.constant 0 : index
    %29 = vector.load %arg8[%c0_20, %c0_21] : memref<128x128xbf16, #tpu.memory_space<vmem>>, vector<128x128xbf16>
    %cst_22 = arith.constant dense<0.000000e+00> : vector<2x128xf32>
    %30 = tpu.matmul %28, %29, %cst_22 {dimension_numbers = #tpu.dot_dimension_numbers<[1], [0], [0], [1], [0, 0, 1, 1], [], []>} : vector<2x128xbf16>, vector<128x128xbf16>, vector<2x128xf32> -> vector<2x128xf32>
    %c0_23 = arith.constant 0 : index
    %c0_24 = arith.constant 0 : index
    %31 = vector.load %arg9[%c0_23, %c0_24] : memref<1x128xf32, #tpu.memory_space<vmem>>, vector<1x128xf32>
    %32 = vector.broadcast %31 : vector<1x128xf32> to vector<2x128xf32>
    %33 = arith.addf %30, %32 : vector<2x128xf32>
    %cst_25 = arith.constant 0.000000e+00 : f32
    %34 = vector.broadcast %cst_25 : f32 to vector<2x128xf32>
    %35 = arith.maximumf %33, %34 : vector<2x128xf32>
    %36 = arith.truncf %35 : vector<2x128xf32> to vector<2x128xbf16>
    %c0_26 = arith.constant 0 : index
    %c0_27 = arith.constant 0 : index
    %37 = vector.load %arg10[%c0_26, %c0_27] : memref<128x128xbf16, #tpu.memory_space<vmem>>, vector<128x128xbf16>
    %cst_28 = arith.constant dense<0.000000e+00> : vector<2x128xf32>
    %38 = tpu.matmul %36, %37, %cst_28 {dimension_numbers = #tpu.dot_dimension_numbers<[1], [0], [0], [1], [0, 0, 1, 1], [], []>} : vector<2x128xbf16>, vector<128x128xbf16>, vector<2x128xf32> -> vector<2x128xf32>
    %c0_29 = arith.constant 0 : index
    %c0_30 = arith.constant 0 : index
    %39 = vector.load %arg11[%c0_29, %c0_30] : memref<1x128xf32, #tpu.memory_space<vmem>>, vector<1x128xf32>
    %40 = vector.broadcast %39 : vector<1x128xf32> to vector<2x128xf32>
    %41 = arith.addf %38, %40 : vector<2x128xf32>
    %cst_31 = arith.constant 0.000000e+00 : f32
    %42 = vector.broadcast %cst_31 : f32 to vector<2x128xf32>
    %43 = arith.maximumf %41, %42 : vector<2x128xf32>
    %44 = arith.truncf %43 : vector<2x128xf32> to vector<2x128xbf16>
    %c0_32 = arith.constant 0 : index
    %c0_33 = arith.constant 0 : index
    %45 = vector.load %arg12[%c0_32, %c0_33] : memref<128x128xbf16, #tpu.memory_space<vmem>>, vector<128x128xbf16>
    %cst_34 = arith.constant dense<0.000000e+00> : vector<2x128xf32>
    %46 = tpu.matmul %44, %45, %cst_34 {dimension_numbers = #tpu.dot_dimension_numbers<[1], [0], [0], [1], [0, 0, 1, 1], [], []>} : vector<2x128xbf16>, vector<128x128xbf16>, vector<2x128xf32> -> vector<2x128xf32>
    %c0_35 = arith.constant 0 : index
    %c0_36 = arith.constant 0 : index
    %47 = vector.load %arg13[%c0_35, %c0_36] : memref<1x128xf32, #tpu.memory_space<vmem>>, vector<1x128xf32>
    %48 = vector.broadcast %47 : vector<1x128xf32> to vector<2x128xf32>
    %49 = arith.addf %46, %48 : vector<2x128xf32>
    %c0_37 = arith.constant 0 : index
    %c0_38 = arith.constant 0 : index
    %50 = vector.load %arg14[%c0_37, %c0_38] : memref<2x128xf32, #tpu.memory_space<vmem>>, vector<2x128xf32>
    tpu.vector_store %arg14[%c0_37, %c0_38], %49 {strides = array<i32>} : memref<2x128xf32, #tpu.memory_space<vmem>>, vector<2x128xf32>,
    return
  }
  func.func @transform_0(%arg0: i32) -> (i32, i32) {
    %c0_i32 = arith.constant 0 : i32
    %c0_i32_0 = arith.constant 0 : i32
    return %arg0, %c0_i32 : i32, i32
  }
  func.func @transform_1(%arg0: i32) -> (i32, i32) {
    %c0_i32 = arith.constant 0 : i32
    %c0_i32_0 = arith.constant 0 : i32
    %c0_i32_1 = arith.constant 0 : i32
    return %c0_i32, %c0_i32_0 : i32, i32
  }
  func.func @transform_2(%arg0: i32) -> (i32, i32) {
    %c0_i32 = arith.constant 0 : i32
    %c0_i32_0 = arith.constant 0 : i32
    %c0_i32_1 = arith.constant 0 : i32
    return %c0_i32, %c0_i32_0 : i32, i32
  }
  func.func @transform_3(%arg0: i32) -> (i32, i32) {
    %c0_i32 = arith.constant 0 : i32
    %c0_i32_0 = arith.constant 0 : i32
    %c0_i32_1 = arith.constant 0 : i32
    return %c0_i32, %c0_i32_0 : i32, i32
  }
  func.func @transform_4(%arg0: i32) -> (i32, i32) {
    %c0_i32 = arith.constant 0 : i32
    %c0_i32_0 = arith.constant 0 : i32
    %c0_i32_1 = arith.constant 0 : i32
    return %c0_i32, %c0_i32_0 : i32, i32
  }
  func.func @transform_5(%arg0: i32) -> (i32, i32) {
    %c0_i32 = arith.constant 0 : i32
    %c0_i32_0 = arith.constant 0 : i32
    %c0_i32_1 = arith.constant 0 : i32
    return %c0_i32, %c0_i32_0 : i32, i32
  }
  func.func @transform_6(%arg0: i32) -> (i32, i32) {
    %c0_i32 = arith.constant 0 : i32
    %c0_i32_0 = arith.constant 0 : i32
    %c0_i32_1 = arith.constant 0 : i32
    return %c0_i32, %c0_i32_0 : i32, i32
  }
  func.func @transform_7(%arg0: i32) -> (i32, i32) {
    %c0_i32 = arith.constant 0 : i32
    %c0_i32_0 = arith.constant 0 : i32
    %c0_i32_1 = arith.constant 0 : i32
    return %c0_i32, %c0_i32_0 : i32, i32
  }
  func.func @transform_8(%arg0: i32) -> (i32, i32) {
    %c0_i32 = arith.constant 0 : i32
    %c0_i32_0 = arith.constant 0 : i32
    %c0_i32_1 = arith.constant 0 : i32
    return %c0_i32, %c0_i32_0 : i32, i32
  }
  func.func @transform_9(%arg0: i32) -> (i32, i32) {
    %c0_i32 = arith.constant 0 : i32
    %c0_i32_0 = arith.constant 0 : i32
    %c0_i32_1 = arith.constant 0 : i32
    return %c0_i32, %c0_i32_0 : i32, i32
  }
  func.func @transform_10(%arg0: i32) -> (i32, i32) {
    %c0_i32 = arith.constant 0 : i32
    %c0_i32_0 = arith.constant 0 : i32
    %c0_i32_1 = arith.constant 0 : i32
    return %c0_i32, %c0_i32_0 : i32, i32
  }
  func.func @transform_11(%arg0: i32) -> (i32, i32) {
    %c0_i32 = arith.constant 0 : i32
    %c0_i32_0 = arith.constant 0 : i32
    %c0_i32_1 = arith.constant 0 : i32
    return %c0_i32, %c0_i32_0 : i32, i32
  }
  func.func @transform_12(%arg0: i32) -> (i32, i32) {
    %c0_i32 = arith.constant 0 : i32
    %c0_i32_0 = arith.constant 0 : i32
    %c0_i32_1 = arith.constant 0 : i32
    return %c0_i32, %c0_i32_0 : i32, i32
  }
  func.func @transform_13(%arg0: i32) -> (i32, i32) {
    %c0_i32 = arith.constant 0 : i32
    %c0_i32_0 = arith.constant 0 : i32
    return %arg0, %c0_i32 : i32, i32
  }
}

</mosaic_0001>

<llo_original>
// kernel: tpu_custom_call.1
$region0: #{tpu_custom_call.1}
  #allocation0 [shape = 'u32[]', space=smem, size = 0x4, offset = 0x4, fixed_abs, tag = 'smem constant byte address 0x4 - core index']
  #allocation1 [shape = 'u32[144,128]{1,0:T(1,128)}', space=vmem, size = 0x12000, scoped, tag = 'internal scratch']
  %s0 = inlined_call_operand.hbm [shape: bf16[16,128], index: 0, kind: input, shape index: {}]
  %s1 = inlined_call_operand.hbm [shape: bf16[128,128], index: 1, kind: input, shape index: {}]
  %s2 = inlined_call_operand.vmem [shape: f32[1,128], index: 2, kind: input, shape index: {}]
  %s3 = inlined_call_operand.hbm [shape: bf16[128,128], index: 3, kind: input, shape index: {}]
  %s4 = inlined_call_operand.vmem [shape: f32[1,128], index: 4, kind: input, shape index: {}]
  %s5 = inlined_call_operand.hbm [shape: bf16[128,128], index: 5, kind: input, shape index: {}]
  %s6 = inlined_call_operand.vmem [shape: f32[1,128], index: 6, kind: input, shape index: {}]
  %s7 = inlined_call_operand.hbm [shape: bf16[128,128], index: 7, kind: input, shape index: {}]
  %s8 = inlined_call_operand.vmem [shape: f32[1,128], index: 8, kind: input, shape index: {}]
  %s9 = inlined_call_operand.hbm [shape: bf16[128,128], index: 9, kind: input, shape index: {}]
  %s10 = inlined_call_operand.vmem [shape: f32[1,128], index: 10, kind: input, shape index: {}]
  %s11 = inlined_call_operand.hbm [shape: bf16[128,128], index: 11, kind: input, shape index: {}]
  %s12 = inlined_call_operand.vmem [shape: f32[1,128], index: 12, kind: input, shape index: {}]
  %s13 = inlined_call_operand.hbm [shape: f32[2,128], index: 13, kind: output, shape index: {}]
  %s14 = sld [smem:[#allocation0]]
  $region90: #{tpu_custom_call.1} parent=0
    _
  %s16 = ssub.s32 1, %s14
  %s17 = scalar_select 0, %s16, %s14
  $region1: #{tpu_custom_call.1} parent=0
    #allocation2 [shape = 'u8[4096]{0}', space=vmem, size = 0x1000, scoped, tag = 'input window, operand 0, single buffered']
    #allocation3 [shape = 's32[1]{0}', space=sflag, size = 0x4, scoped, tag = 'scoped memory for tpu_custom_call.1']
    #allocation4 [shape = 's32[1]{0}', space=sflag, size = 0x4, scoped, tag = 'scoped memory for tpu_custom_call.1']
    #allocation5 [shape = 'u8[32768]{0}', space=vmem, size = 0x8000, scoped, tag = 'input window, operand 1, single buffered']
    #allocation6 [shape = 's32[1]{0}', space=sflag, size = 0x4, scoped, tag = 'scoped memory for tpu_custom_call.1']
    #allocation7 [shape = 'u8[32768]{0}', space=vmem, size = 0x8000, scoped, tag = 'input window, operand 3, single buffered']
    #allocation8 [shape = 'u8[32768]{0}', space=vmem, size = 0x8000, scoped, tag = 'input window, operand 5, single buffered']
    #allocation9 [shape = 's32[1]{0}', space=sflag, size = 0x4, scoped, tag = 'scoped memory for tpu_custom_call.1']
    #allocation10 [shape = 'u8[32768]{0}', space=vmem, size = 0x8000, scoped, tag = 'input window, operand 7, single buffered']
    #allocation11 [shape = 'u8[32768]{0}', space=vmem, size = 0x8000, scoped, tag = 'input window, operand 9, single buffered']
    #allocation12 [shape = 's32[1]{0}', space=sflag, size = 0x4, scoped, tag = 'scoped memory for tpu_custom_call.1']
    #allocation13 [shape = 'u8[32768]{0}', space=vmem, size = 0x8000, scoped, tag = 'input window, operand 11, single buffered']
    #allocation14 [shape = 'u8[1024]{0}', space=vmem, size = 0x400, scoped, tag = 'output window, operand 0, single buffered']
    %18 = vsyncpa [#allocation3], 0
    %19 = vsyncpa [#allocation6], 0
    %20 = vsyncpa [#allocation9], 0
    %21 = vsyncpa [#allocation12], 0
    %22 = vsyncpa [#allocation4], 0
    // Predicated region
    $region2: #{tpu_custom_call.1} parent=1 // pred_check
      _
    $region3: #{tpu_custom_call.1} parent=1 // pred_check_branch
      %24 = sbr.rel (0) target = $region5
    $region4: #{tpu_custom_call.1} parent=1 // pred_region
      %s26 = ssub.s32 128, 128
      %27 = vsyncadd [#allocation3], %s26
      %s28 = sshll.u32 [#allocation2], 4
      %s29 = int_to_ptr.vmem [resolvable:$true] %s28
      %34 = dma.hbm_to_vmem [thread:$0]  %s0, 128, %s29, [#allocation3], 64, 64, 4
    $region5: #{tpu_custom_call.1} parent=1 // pred_fallthru
      _
    // Predicated region
    $region6: #{tpu_custom_call.1} parent=1 // pred_check
      _
    $region7: #{tpu_custom_call.1} parent=1 // pred_check_branch
      %36 = sbr.rel (0) target = $region9
    $region8: #{tpu_custom_call.1} parent=1 // pred_region
      %s38 = ssub.s32 1024, 1024
      %39 = vsyncadd [#allocation6], %s38
      %s40 = sshll.u32 [#allocation5], 4
      %s41 = int_to_ptr.vmem [resolvable:$true] %s40
      %46 = dma.hbm_to_vmem [thread:$0]  %s1, 1024, %s41, [#allocation6], 64, 64, 4
    $region9: #{tpu_custom_call.1} parent=1 // pred_fallthru
      _
    // Predicated region
    $region10: #{tpu_custom_call.1} parent=1 // pred_check
      _
    $region11: #{tpu_custom_call.1} parent=1 // pred_check_branch
      %48 = sbr.rel (0) target = $region13
    $region12: #{tpu_custom_call.1} parent=1 // pred_region
      _
    $region13: #{tpu_custom_call.1} parent=1 // pred_fallthru
      _
    // Predicated region
    $region14: #{tpu_custom_call.1} parent=1 // pred_check
      _
    $region15: #{tpu_custom_call.1} parent=1 // pred_check_branch
      %50 = sbr.rel (0) target = $region17
    $region16: #{tpu_custom_call.1} parent=1 // pred_region
      %s52 = ssub.s32 1024, 1024
      %53 = vsyncadd [#allocation6], %s52
      %s54 = sshll.u32 [#allocation7], 4
      %s55 = int_to_ptr.vmem [resolvable:$true] %s54
      %60 = dma.hbm_to_vmem [thread:$0]  %s3, 1024, %s55, [#allocation6], 64, 64, 4
    $region17: #{tpu_custom_call.1} parent=1 // pred_fallthru
      _
    // Predicated region
    $region18: #{tpu_custom_call.1} parent=1 // pred_check
      _
    $region19: #{tpu_custom_call.1} parent=1 // pred_check_branch
      %62 = sbr.rel (0) target = $region21
    $region20: #{tpu_custom_call.1} parent=1 // pred_region
      _
    $region21: #{tpu_custom_call.1} parent=1 // pred_fallthru
      _
    // Predicated region
    $region22: #{tpu_custom_call.1} parent=1 // pred_check
      _
    $region23: #{tpu_custom_call.1} parent=1 // pred_check_branch
      %64 = sbr.rel (0) target = $region25
    $region24: #{tpu_custom_call.1} parent=1 // pred_region
      %s66 = ssub.s32 1024, 1024
      %67 = vsyncadd [#allocation9], %s66
      %s68 = sshll.u32 [#allocation8], 4
      %s69 = int_to_ptr.vmem [resolvable:$true] %s68
      %74 = dma.hbm_to_vmem [thread:$0]  %s5, 1024, %s69, [#allocation9], 64, 64, 4
    $region25: #{tpu_custom_call.1} parent=1 // pred_fallthru
      _
    // Predicated region
    $region26: #{tpu_custom_call.1} parent=1 // pred_check
      _
    $region27: #{tpu_custom_call.1} parent=1 // pred_check_branch
      %76 = sbr.rel (0) target = $region29
    $region28: #{tpu_custom_call.1} parent=1 // pred_region
      _
    $region29: #{tpu_custom_call.1} parent=1 // pred_fallthru
      _
    // Predicated region
    $region30: #{tpu_custom_call.1} parent=1 // pred_check
      _
    $region31: #{tpu_custom_call.1} parent=1 // pred_check_branch
      %78 = sbr.rel (0) target = $region33
    $region32: #{tpu_custom_call.1} parent=1 // pred_region
      %s80 = ssub.s32 1024, 1024
      %81 = vsyncadd [#allocation9], %s80
      %s82 = sshll.u32 [#allocation10], 4
      %s83 = int_to_ptr.vmem [resolvable:$true] %s82
      %88 = dma.hbm_to_vmem [thread:$0]  %s7, 1024, %s83, [#allocation9], 64, 64, 4
    $region33: #{tpu_custom_call.1} parent=1 // pred_fallthru
      _
    // Predicated region
    $region34: #{tpu_custom_call.1} parent=1 // pred_check
      _
    $region35: #{tpu_custom_call.1} parent=1 // pred_check_branch
      %90 = sbr.rel (0) target = $region37
    $region36: #{tpu_custom_call.1} parent=1 // pred_region
      _
    $region37: #{tpu_custom_call.1} parent=1 // pred_fallthru
      _
    // Predicated region
    $region38: #{tpu_custom_call.1} parent=1 // pred_check
      _
    $region39: #{tpu_custom_call.1} parent=1 // pred_check_branch
      %92 = sbr.rel (0) target = $region41
    $region40: #{tpu_custom_call.1} parent=1 // pred_region
      %s94 = ssub.s32 1024, 1024
      %95 = vsyncadd [#allocation12], %s94
      %s96 = sshll.u32 [#allocation11], 4
      %s97 = int_to_ptr.vmem [resolvable:$true] %s96
      %102 = dma.hbm_to_vmem [thread:$0]  %s9, 1024, %s97, [#allocation12], 64, 64, 4
    $region41: #{tpu_custom_call.1} parent=1 // pred_fallthru
      _
    // Predicated region
    $region42: #{tpu_custom_call.1} parent=1 // pred_check
      _
    $region43: #{tpu_custom_call.1} parent=1 // pred_check_branch
      %104 = sbr.rel (0) target = $region45
    $region44: #{tpu_custom_call.1} parent=1 // pred_region
      _
    $region45: #{tpu_custom_call.1} parent=1 // pred_fallthru
      _
    // Predicated region
    $region46: #{tpu_custom_call.1} parent=1 // pred_check
      _
    $region47: #{tpu_custom_call.1} parent=1 // pred_check_branch
      %106 = sbr.rel (0) target = $region49
    $region48: #{tpu_custom_call.1} parent=1 // pred_region
      %s108 = ssub.s32 1024, 1024
      %109 = vsyncadd [#allocation12], %s108
      %s110 = sshll.u32 [#allocation13], 4
      %s111 = int_to_ptr.vmem [resolvable:$true] %s110
      %116 = dma.hbm_to_vmem [thread:$0]  %s11, 1024, %s111, [#allocation12], 64, 64, 4
    $region49: #{tpu_custom_call.1} parent=1 // pred_fallthru
      _
    // Predicated region
    $region50: #{tpu_custom_call.1} parent=1 // pred_check
      _
    $region51: #{tpu_custom_call.1} parent=1 // pred_check_branch
      %118 = sbr.rel (0) target = $region53
    $region52: #{tpu_custom_call.1} parent=1 // pred_region
      _
    $region53: #{tpu_custom_call.1} parent=1 // pred_fallthru
      _
    // Predicated region
    $region54: #{tpu_custom_call.1} parent=1 // pred_check
      _
    $region55: #{tpu_custom_call.1} parent=1 // pred_check_branch
      %120 = sbr.rel (0) target = $region57
    $region56: #{tpu_custom_call.1} parent=1 // pred_region
      %121 = dma.done [#allocation3], 128
    $region57: #{tpu_custom_call.1} parent=1 // pred_fallthru
      _
    // Predicated region
    $region58: #{tpu_custom_call.1} parent=1 // pred_check
      _
    $region59: #{tpu_custom_call.1} parent=1 // pred_check_branch
      %123 = sbr.rel (0) target = $region61
    $region60: #{tpu_custom_call.1} parent=1 // pred_region
      %124 = dma.done [#allocation6], 1024
    $region61: #{tpu_custom_call.1} parent=1 // pred_fallthru
      _
    // Predicated region
    $region62: #{tpu_custom_call.1} parent=1 // pred_check
      _
    $region63: #{tpu_custom_call.1} parent=1 // pred_check_branch
      %126 = sbr.rel (0) target = $region65
    $region64: #{tpu_custom_call.1} parent=1 // pred_region
      %127 = dma.done [#allocation6], 1024
    $region65: #{tpu_custom_call.1} parent=1 // pred_fallthru
      _
    // Predicated region
    $region66: #{tpu_custom_call.1} parent=1 // pred_check
      _
    $region67: #{tpu_custom_call.1} parent=1 // pred_check_branch
      %129 = sbr.rel (0) target = $region69
    $region68: #{tpu_custom_call.1} parent=1 // pred_region
      %130 = dma.done [#allocation9], 1024
    $region69: #{tpu_custom_call.1} parent=1 // pred_fallthru
      _
    // Predicated region
    $region70: #{tpu_custom_call.1} parent=1 // pred_check
      _
    $region71: #{tpu_custom_call.1} parent=1 // pred_check_branch
      %132 = sbr.rel (0) target = $region73
    $region72: #{tpu_custom_call.1} parent=1 // pred_region
      %133 = dma.done [#allocation9], 1024
    $region73: #{tpu_custom_call.1} parent=1 // pred_fallthru
      _
    // Predicated region
    $region74: #{tpu_custom_call.1} parent=1 // pred_check
      _
    $region75: #{tpu_custom_call.1} parent=1 // pred_check_branch
      %135 = sbr.rel (0) target = $region77
    $region76: #{tpu_custom_call.1} parent=1 // pred_region
      %136 = dma.done [#allocation12], 1024
    $region77: #{tpu_custom_call.1} parent=1 // pred_fallthru
      _
    // Predicated region
    $region78: #{tpu_custom_call.1} parent=1 // pred_check
      _
    $region79: #{tpu_custom_call.1} parent=1 // pred_check_branch
      %138 = sbr.rel (0) target = $region81
    $region80: #{tpu_custom_call.1} parent=1 // pred_region
      %139 = dma.done [#allocation12], 1024
    $region81: #{tpu_custom_call.1} parent=1 // pred_fallthru
      _
    %v141 = vld [vmem:[#allocation2] sm:$0xf]
    %v142 = vld [vmem:[#allocation2 + $0x4] sm:$0xf]
    %v143 = vld [vmem:[#allocation5] sm:$0xf]
    %v144 = vld [vmem:[#allocation5 + $0x4] sm:$0xf]
    %v145 = vld [vmem:[#allocation5 + $0x8] sm:$0xf]
    %v146 = vld [vmem:[#allocation5 + $0xc] sm:$0xf]
    %v147 = vld [vmem:[#allocation5 + $0x10] sm:$0xf]
    %v148 = vld [vmem:[#allocation5 + $0x14] sm:$0xf]
    %v149 = vld [vmem:[#allocation5 + $0x18] sm:$0xf]
    %v150 = vld [vmem:[#allocation5 + $0x1c] sm:$0xf]
    %v151 = vld [vmem:[#allocation5 + $0x20] sm:$0xf]
    %v152 = vld [vmem:[#allocation5 + $0x24] sm:$0xf]
    %v153 = vld [vmem:[#allocation5 + $0x28] sm:$0xf]
    %v154 = vld [vmem:[#allocation5 + $0x2c] sm:$0xf]
    %v155 = vld [vmem:[#allocation5 + $0x30] sm:$0xf]
    %v156 = vld [vmem:[#allocation5 + $0x34] sm:$0xf]
    %v157 = vld [vmem:[#allocation5 + $0x38] sm:$0xf]
    %v158 = vld [vmem:[#allocation5 + $0x3c] sm:$0xf]
    %v159 = vld [vmem:[%s2] sm:$0x1]
    %v161 = vlaneseq
    %v162 = vshrl.u32 %v161, 7
    %v163 = vsub.s32 0, %v162
    %v164 = vrot.slane %v159, %v163
    %v168 = vunpack.c.l.b16 %v141
    %v169 = vunpack.c.l.b16 %v142
    %v170 = vpack.c.b16 %v169, %v168
    %v188 = vunpack.c.l.b16 %v143
    %v189 = vunpack.c.l.b16 %v144
    %v190 = vunpack.c.l.b16 %v145
    %v191 = vunpack.c.l.b16 %v146
    %v192 = vunpack.c.l.b16 %v147
    %v193 = vunpack.c.l.b16 %v148
    %v194 = vunpack.c.l.b16 %v149
    %v195 = vunpack.c.l.b16 %v150
    %v196 = vunpack.c.l.b16 %v151
    %v197 = vunpack.c.l.b16 %v152
    %v198 = vunpack.c.l.b16 %v153
    %v199 = vunpack.c.l.b16 %v154
    %v200 = vunpack.c.l.b16 %v155
    %v201 = vunpack.c.l.b16 %v156
    %v202 = vunpack.c.l.b16 %v157
    %v203 = vunpack.c.l.b16 %v158
    %v204 = vpack.c.b16 %v189, %v188
    %v205 = vpack.c.b16 %v191, %v190
    %v206 = vpack.c.b16 %v193, %v192
    %v207 = vpack.c.b16 %v195, %v194
    %v208 = vpack.c.b16 %v197, %v196
    %v209 = vpack.c.b16 %v199, %v198
    %v210 = vpack.c.b16 %v201, %v200
    %v211 = vpack.c.b16 %v203, %v202
    %220 = vmatprep.subr.bf16.mxu0 0
    %221 = vmatpush1.bf16.msra.mxu0 %v204
    %222 = vmatprep.subr.bf16.mxu0 0
    %223 = vmatpush1.bf16.msra.mxu0 %v205
    %224 = vmatprep.subr.bf16.mxu0 0
    %225 = vmatpush1.bf16.msra.mxu0 %v206
    %226 = vmatprep.subr.bf16.mxu0 0
    %227 = vmatpush1.bf16.msra.mxu0 %v207
    %228 = vmatprep.subr.bf16.mxu0 0
    %229 = vmatpush1.bf16.msra.mxu0 %v208
    %230 = vmatprep.subr.bf16.mxu0 0
    %231 = vmatpush1.bf16.msra.mxu0 %v209
    %232 = vmatprep.subr.bf16.mxu0 0
    %233 = vmatpush1.bf16.msra.mxu0 %v210
    %234 = vmatprep.subr.bf16.mxu0 0
    %235 = vmatpush1.bf16.msra.mxu0 %v211
    %236 = vmatprep.subr.bf16.mxu0 0
    %237 = vmatpush1.bf16.msra.mxu0 0
    %238 = vmatprep.subr.bf16.mxu0 0
    %239 = vmatpush1.bf16.msra.mxu0 0
    %240 = vmatprep.subr.bf16.mxu0 0
    %241 = vmatpush1.bf16.msra.mxu0 0
    %242 = vmatprep.subr.bf16.mxu0 0
    %243 = vmatpush1.bf16.msra.mxu0 0
    %244 = vmatprep.subr.bf16.mxu0 0
    %245 = vmatpush1.bf16.msra.mxu0 0
    %246 = vmatprep.subr.bf16.mxu0 0
    %247 = vmatpush1.bf16.msra.mxu0 0
    %248 = vmatprep.subr.bf16.mxu0 0
    %249 = vmatpush1.bf16.msra.mxu0 0
    %250 = vmatprep.subr.bf16.mxu0 0
    %251 = vmatpush1.bf16.msra.mxu0 0
    %252 = vmatprep.mubr.bf16.mxu0 0
    %253 = vmatmul.mubr.bf16.gmra.mrb[0].mxu0 %v170
    %v254 = vpop.f32.mrb[0].mxu0
    %v255 = vadd.f32 %v164, %v254
    %v256 = vpop.f32.mrb[0].mxu0
    %v257 = vpop.f32.mrb[0].mxu0
    %v258 = vadd.f32 %v164, %v257
    %v259 = vpop.f32.mrb[0].mxu0
    %260 = vdwg.mxu0
    %v261 = vmax.f32 %v255, 0.0
    %v262 = vmax.f32 %v258, 0.0
    %v263 = vpack.c.bf16 %v262, %v261
    %v264 = vld [vmem:[#allocation7] sm:$0xf]
    %v265 = vld [vmem:[#allocation7 + $0x4] sm:$0xf]
    %v266 = vld [vmem:[#allocation7 + $0x8] sm:$0xf]
    %v267 = vld [vmem:[#allocation7 + $0xc] sm:$0xf]
    %v268 = vld [vmem:[#allocation7 + $0x10] sm:$0xf]
    %v269 = vld [vmem:[#allocation7 + $0x14] sm:$0xf]
    %v270 = vld [vmem:[#allocation7 + $0x18] sm:$0xf]
    %v271 = vld [vmem:[#allocation7 + $0x1c] sm:$0xf]
    %v272 = vld [vmem:[#allocation7 + $0x20] sm:$0xf]
    %v273 = vld [vmem:[#allocation7 + $0x24] sm:$0xf]
    %v274 = vld [vmem:[#allocation7 + $0x28] sm:$0xf]
    %v275 = vld [vmem:[#allocation7 + $0x2c] sm:$0xf]
    %v276 = vld [vmem:[#allocation7 + $0x30] sm:$0xf]
    %v277 = vld [vmem:[#allocation7 + $0x34] sm:$0xf]
    %v278 = vld [vmem:[#allocation7 + $0x38] sm:$0xf]
    %v279 = vld [vmem:[#allocation7 + $0x3c] sm:$0xf]
    %v280 = vld [vmem:[%s4] sm:$0x1]
    %v282 = vlaneseq
    %v283 = vshrl.u32 %v282, 7
    %v284 = vsub.s32 0, %v283
    %v285 = vrot.slane %v280, %v284
    %v303 = vunpack.c.l.b16 %v264
    %v304 = vunpack.c.l.b16 %v265
    %v305 = vunpack.c.l.b16 %v266
    %v306 = vunpack.c.l.b16 %v267
    %v307 = vunpack.c.l.b16 %v268
    %v308 = vunpack.c.l.b16 %v269
    %v309 = vunpack.c.l.b16 %v270
    %v310 = vunpack.c.l.b16 %v271
    %v311 = vunpack.c.l.b16 %v272
    %v312 = vunpack.c.l.b16 %v273
    %v313 = vunpack.c.l.b16 %v274
    %v314 = vunpack.c.l.b16 %v275
    %v315 = vunpack.c.l.b16 %v276
    %v316 = vunpack.c.l.b16 %v277
    %v317 = vunpack.c.l.b16 %v278
    %v318 = vunpack.c.l.b16 %v279
    %v319 = vpack.c.b16 %v304, %v303
    %v320 = vpack.c.b16 %v306, %v305
    %v321 = vpack.c.b16 %v308, %v307
    %v322 = vpack.c.b16 %v310, %v309
    %v323 = vpack.c.b16 %v312, %v311
    %v324 = vpack.c.b16 %v314, %v313
    %v325 = vpack.c.b16 %v316, %v315
    %v326 = vpack.c.b16 %v318, %v317
    %335 = vmatprep.subr.bf16.mxu0 0
    %336 = vmatpush1.bf16.msra.mxu0 %v319
    %337 = vmatprep.subr.bf16.mxu0 0
    %338 = vmatpush1.bf16.msra.mxu0 %v320
    %339 = vmatprep.subr.bf16.mxu0 0
    %340 = vmatpush1.bf16.msra.mxu0 %v321
    %341 = vmatprep.subr.bf16.mxu0 0
    %342 = vmatpush1.bf16.msra.mxu0 %v322
    %343 = vmatprep.subr.bf16.mxu0 0
    %344 = vmatpush1.bf16.msra.mxu0 %v323
    %345 = vmatprep.subr.bf16.mxu0 0
    %346 = vmatpush1.bf16.msra.mxu0 %v324
    %347 = vmatprep.subr.bf16.mxu0 0
    %348 = vmatpush1.bf16.msra.mxu0 %v325
    %349 = vmatprep.subr.bf16.mxu0 0
    %350 = vmatpush1.bf16.msra.mxu0 %v326
    %351 = vmatprep.subr.bf16.mxu0 0
    %352 = vmatpush1.bf16.msra.mxu0 0
    %353 = vmatprep.subr.bf16.mxu0 0
    %354 = vmatpush1.bf16.msra.mxu0 0
    %355 = vmatprep.subr.bf16.mxu0 0
    %356 = vmatpush1.bf16.msra.mxu0 0
    %357 = vmatprep.subr.bf16.mxu0 0
    %358 = vmatpush1.bf16.msra.mxu0 0
    %359 = vmatprep.subr.bf16.mxu0 0
    %360 = vmatpush1.bf16.msra.mxu0 0
    %361 = vmatprep.subr.bf16.mxu0 0
    %362 = vmatpush1.bf16.msra.mxu0 0
    %363 = vmatprep.subr.bf16.mxu0 0
    %364 = vmatpush1.bf16.msra.mxu0 0
    %365 = vmatprep.subr.bf16.mxu0 0
    %366 = vmatpush1.bf16.msra.mxu0 0
    %367 = vmatprep.mubr.bf16.mxu0 0
    %368 = vmatmul.mubr.bf16.gmra.mrb[0].mxu0 %v263
    %v369 = vpop.f32.mrb[0].mxu0
    %v370 = vadd.f32 %v285, %v369
    %v371 = vpop.f32.mrb[0].mxu0
    %v372 = vpop.f32.mrb[0].mxu0
    %v373 = vadd.f32 %v285, %v372
    %v374 = vpop.f32.mrb[0].mxu0
    %375 = vdwg.mxu0
    %v376 = vmax.f32 %v370, 0.0
    %v377 = vmax.f32 %v373, 0.0
    %v378 = vpack.c.bf16 %v377, %v376
    %v379 = vld [vmem:[#allocation8] sm:$0xf]
    %v380 = vld [vmem:[#allocation8 + $0x4] sm:$0xf]
    %v381 = vld [vmem:[#allocation8 + $0x8] sm:$0xf]
    %v382 = vld [vmem:[#allocation8 + $0xc] sm:$0xf]
    %v383 = vld [vmem:[#allocation8 + $0x10] sm:$0xf]
    %v384 = vld [vmem:[#allocation8 + $0x14] sm:$0xf]
    %v385 = vld [vmem:[#allocation8 + $0x18] sm:$0xf]
    %v386 = vld [vmem:[#allocation8 + $0x1c] sm:$0xf]
    %v387 = vld [vmem:[#allocation8 + $0x20] sm:$0xf]
    %v388 = vld [vmem:[#allocation8 + $0x24] sm:$0xf]
    %v389 = vld [vmem:[#allocation8 + $0x28] sm:$0xf]
    %v390 = vld [vmem:[#allocation8 + $0x2c] sm:$0xf]
    %v391 = vld [vmem:[#allocation8 + $0x30] sm:$0xf]
    %v392 = vld [vmem:[#allocation8 + $0x34] sm:$0xf]
    %v393 = vld [vmem:[#allocation8 + $0x38] sm:$0xf]
    %v394 = vld [vmem:[#allocation8 + $0x3c] sm:$0xf]
    %v395 = vld [vmem:[%s6] sm:$0x1]
    %v397 = vlaneseq
    %v398 = vshrl.u32 %v397, 7
    %v399 = vsub.s32 0, %v398
    %v400 = vrot.slane %v395, %v399
    %v418 = vunpack.c.l.b16 %v379
    %v419 = vunpack.c.l.b16 %v380
    %v420 = vunpack.c.l.b16 %v381
    %v421 = vunpack.c.l.b16 %v382
    %v422 = vunpack.c.l.b16 %v383
    %v423 = vunpack.c.l.b16 %v384
    %v424 = vunpack.c.l.b16 %v385
    %v425 = vunpack.c.l.b16 %v386
    %v426 = vunpack.c.l.b16 %v387
    %v427 = vunpack.c.l.b16 %v388
    %v428 = vunpack.c.l.b16 %v389
    %v429 = vunpack.c.l.b16 %v390
    %v430 = vunpack.c.l.b16 %v391
    %v431 = vunpack.c.l.b16 %v392
    %v432 = vunpack.c.l.b16 %v393
    %v433 = vunpack.c.l.b16 %v394
    %v434 = vpack.c.b16 %v419, %v418
    %v435 = vpack.c.b16 %v421, %v420
    %v436 = vpack.c.b16 %v423, %v422
    %v437 = vpack.c.b16 %v425, %v424
    %v438 = vpack.c.b16 %v427, %v426
    %v439 = vpack.c.b16 %v429, %v428
    %v440 = vpack.c.b16 %v431, %v430
    %v441 = vpack.c.b16 %v433, %v432
    %450 = vmatprep.subr.bf16.mxu0 0
    %451 = vmatpush1.bf16.msra.mxu0 %v434
    %452 = vmatprep.subr.bf16.mxu0 0
    %453 = vmatpush1.bf16.msra.mxu0 %v435
    %454 = vmatprep.subr.bf16.mxu0 0
    %455 = vmatpush1.bf16.msra.mxu0 %v436
    %456 = vmatprep.subr.bf16.mxu0 0
    %457 = vmatpush1.bf16.msra.mxu0 %v437
    %458 = vmatprep.subr.bf16.mxu0 0
    %459 = vmatpush1.bf16.msra.mxu0 %v438
    %460 = vmatprep.subr.bf16.mxu0 0
    %461 = vmatpush1.bf16.msra.mxu0 %v439
    %462 = vmatprep.subr.bf16.mxu0 0
    %463 = vmatpush1.bf16.msra.mxu0 %v440
    %464 = vmatprep.subr.bf16.mxu0 0
    %465 = vmatpush1.bf16.msra.mxu0 %v441
    %466 = vmatprep.subr.bf16.mxu0 0
    %467 = vmatpush1.bf16.msra.mxu0 0
    %468 = vmatprep.subr.bf16.mxu0 0
    %469 = vmatpush1.bf16.msra.mxu0 0
    %470 = vmatprep.subr.bf16.mxu0 0
    %471 = vmatpush1.bf16.msra.mxu0 0
    %472 = vmatprep.subr.bf16.mxu0 0
    %473 = vmatpush1.bf16.msra.mxu0 0
    %474 = vmatprep.subr.bf16.mxu0 0
    %475 = vmatpush1.bf16.msra.mxu0 0
    %476 = vmatprep.subr.bf16.mxu0 0
    %477 = vmatpush1.bf16.msra.mxu0 0
    %478 = vmatprep.subr.bf16.mxu0 0
    %479 = vmatpush1.bf16.msra.mxu0 0
    %480 = vmatprep.subr.bf16.mxu0 0
    %481 = vmatpush1.bf16.msra.mxu0 0
    %482 = vmatprep.mubr.bf16.mxu0 0
    %483 = vmatmul.mubr.bf16.gmra.mrb[0].mxu0 %v378
    %v484 = vpop.f32.mrb[0].mxu0
    %v485 = vadd.f32 %v400, %v484
    %v486 = vpop.f32.mrb[0].mxu0
    %v487 = vpop.f32.mrb[0].mxu0
    %v488 = vadd.f32 %v400, %v487
    %v489 = vpop.f32.mrb[0].mxu0
    %490 = vdwg.mxu0
    %v491 = vmax.f32 %v485, 0.0
    %v492 = vmax.f32 %v488, 0.0
    %v493 = vrot.slane %v491, 4
    %v494 = vadd.f32 %v491, %v493
    %v495 = vrot.slane %v494, 2
    %v496 = vadd.f32 %v494, %v495
    %v497 = vrot.slane %v496, 1
    %v498 = vadd.f32 %v496, %v497
    %v499 = vrot.slane %v492, 4
    %v500 = vadd.f32 %v492, %v499
    %v501 = vrot.slane %v500, 2
    %v502 = vadd.f32 %v500, %v501
    %v503 = vrot.slane %v502, 1
    %v504 = vadd.f32 %v502, %v503
    %v505 = vmul.f32 %v498, 0.125
    %v506 = vmul.f32 %v504, 0.125
    %v507 = vpack.c.bf16 %v505, %v505
    %v508 = vpack.c.bf16 %v506, %v506
    %v509 = vld [vmem:[#allocation10] sm:$0xf]
    %v510 = vld [vmem:[#allocation10 + $0x4] sm:$0xf]
    %v511 = vld [vmem:[#allocation10 + $0x8] sm:$0xf]
    %v512 = vld [vmem:[#allocation10 + $0xc] sm:$0xf]
    %v513 = vld [vmem:[#allocation10 + $0x10] sm:$0xf]
    %v514 = vld [vmem:[#allocation10 + $0x14] sm:$0xf]
    %v515 = vld [vmem:[#allocation10 + $0x18] sm:$0xf]
    %v516 = vld [vmem:[#allocation10 + $0x1c] sm:$0xf]
    %v517 = vld [vmem:[#allocation10 + $0x20] sm:$0xf]
    %v518 = vld [vmem:[#allocation10 + $0x24] sm:$0xf]
    %v519 = vld [vmem:[#allocation10 + $0x28] sm:$0xf]
    %v520 = vld [vmem:[#allocation10 + $0x2c] sm:$0xf]
    %v521 = vld [vmem:[#allocation10 + $0x30] sm:$0xf]
    %v522 = vld [vmem:[#allocation10 + $0x34] sm:$0xf]
    %v523 = vld [vmem:[#allocation10 + $0x38] sm:$0xf]
    %v524 = vld [vmem:[#allocation10 + $0x3c] sm:$0xf]
    %v525 = vld [vmem:[%s8] sm:$0x1]
    %v527 = vlaneseq
    %v528 = vshrl.u32 %v527, 7
    %v529 = vsub.s32 0, %v528
    %v530 = vrot.slane %v525, %v529
    %v534 = vunpack.c.l.b16 %v507
    %v535 = vunpack.c.l.b16 %v508
    %vm536 = vcmask 1041409
    %v537 = vsel %vm536, %v535, %v534
    %v538 = vpack.c.b16 %v537, %v537
    %v556 = vunpack.c.l.b16 %v509
    %v557 = vunpack.c.l.b16 %v510
    %v558 = vunpack.c.l.b16 %v511
    %v559 = vunpack.c.l.b16 %v512
    %v560 = vunpack.c.l.b16 %v513
    %v561 = vunpack.c.l.b16 %v514
    %v562 = vunpack.c.l.b16 %v515
    %v563 = vunpack.c.l.b16 %v516
    %v564 = vunpack.c.l.b16 %v517
    %v565 = vunpack.c.l.b16 %v518
    %v566 = vunpack.c.l.b16 %v519
    %v567 = vunpack.c.l.b16 %v520
    %v568 = vunpack.c.l.b16 %v521
    %v569 = vunpack.c.l.b16 %v522
    %v570 = vunpack.c.l.b16 %v523
    %v571 = vunpack.c.l.b16 %v524
    %v572 = vpack.c.b16 %v557, %v556
    %v573 = vpack.c.b16 %v559, %v558
    %v574 = vpack.c.b16 %v561, %v560
    %v575 = vpack.c.b16 %v563, %v562
    %v576 = vpack.c.b16 %v565, %v564
    %v577 = vpack.c.b16 %v567, %v566
    %v578 = vpack.c.b16 %v569, %v568
    %v579 = vpack.c.b16 %v571, %v570
    %588 = vmatprep.subr.bf16.mxu0 0
    %589 = vmatpush1.bf16.msra.mxu0 %v572
    %590 = vmatprep.subr.bf16.mxu0 0
    %591 = vmatpush1.bf16.msra.mxu0 %v573
    %592 = vmatprep.subr.bf16.mxu0 0
    %593 = vmatpush1.bf16.msra.mxu0 %v574
    %594 = vmatprep.subr.bf16.mxu0 0
    %595 = vmatpush1.bf16.msra.mxu0 %v575
    %596 = vmatprep.subr.bf16.mxu0 0
    %597 = vmatpush1.bf16.msra.mxu0 %v576
    %598 = vmatprep.subr.bf16.mxu0 0
    %599 = vmatpush1.bf16.msra.mxu0 %v577
    %600 = vmatprep.subr.bf16.mxu0 0
    %601 = vmatpush1.bf16.msra.mxu0 %v578
    %602 = vmatprep.subr.bf16.mxu0 0
    %603 = vmatpush1.bf16.msra.mxu0 %v579
    %604 = vmatprep.subr.bf16.mxu0 0
    %605 = vmatpush1.bf16.msra.mxu0 0
    %606 = vmatprep.subr.bf16.mxu0 0
    %607 = vmatpush1.bf16.msra.mxu0 0
    %608 = vmatprep.subr.bf16.mxu0 0
    %609 = vmatpush1.bf16.msra.mxu0 0
    %610 = vmatprep.subr.bf16.mxu0 0
    %611 = vmatpush1.bf16.msra.mxu0 0
    %612 = vmatprep.subr.bf16.mxu0 0
    %613 = vmatpush1.bf16.msra.mxu0 0
    %614 = vmatprep.subr.bf16.mxu0 0
    %615 = vmatpush1.bf16.msra.mxu0 0
    %616 = vmatprep.subr.bf16.mxu0 0
    %617 = vmatpush1.bf16.msra.mxu0 0
    %618 = vmatprep.subr.bf16.mxu0 0
    %619 = vmatpush1.bf16.msra.mxu0 0
    %620 = vmatprep.mubr.bf16.mxu0 0
    %621 = vmatmul.mubr.bf16.gmra.mrb[0].mxu0 %v538
    %v622 = vpop.f32.mrb[0].mxu0
    %v623 = vadd.f32 %v530, %v622
    %v624 = vpop.f32.mrb[0].mxu0
    %v625 = vpop.f32.mrb[0].mxu0
    %v626 = vpop.f32.mrb[0].mxu0
    %627 = vdwg.mxu0
    %v628 = vmax.f32 %v623, 0.0
    %v629 = vpack.c.bf16 %v628, %v628
    %v630 = vld [vmem:[#allocation11] sm:$0xf]
    %v631 = vld [vmem:[#allocation11 + $0x4] sm:$0xf]
    %v632 = vld [vmem:[#allocation11 + $0x8] sm:$0xf]
    %v633 = vld [vmem:[#allocation11 + $0xc] sm:$0xf]
    %v634 = vld [vmem:[#allocation11 + $0x10] sm:$0xf]
    %v635 = vld [vmem:[#allocation11 + $0x14] sm:$0xf]
    %v636 = vld [vmem:[#allocation11 + $0x18] sm:$0xf]
    %v637 = vld [vmem:[#allocation11 + $0x1c] sm:$0xf]
    %v638 = vld [vmem:[#allocation11 + $0x20] sm:$0xf]
    %v639 = vld [vmem:[#allocation11 + $0x24] sm:$0xf]
    %v640 = vld [vmem:[#allocation11 + $0x28] sm:$0xf]
    %v641 = vld [vmem:[#allocation11 + $0x2c] sm:$0xf]
    %v642 = vld [vmem:[#allocation11 + $0x30] sm:$0xf]
    %v643 = vld [vmem:[#allocation11 + $0x34] sm:$0xf]
    %v644 = vld [vmem:[#allocation11 + $0x38] sm:$0xf]
    %v645 = vld [vmem:[#allocation11 + $0x3c] sm:$0xf]
    %v646 = vld [vmem:[%s10] sm:$0x1]
    %v648 = vlaneseq
    %v649 = vshrl.u32 %v648, 7
    %v650 = vsub.s32 0, %v649
    %v651 = vrot.slane %v646, %v650
    %v669 = vunpack.c.l.b16 %v630
    %v670 = vunpack.c.l.b16 %v631
    %v671 = vunpack.c.l.b16 %v632
    %v672 = vunpack.c.l.b16 %v633
    %v673 = vunpack.c.l.b16 %v634
    %v674 = vunpack.c.l.b16 %v635
    %v675 = vunpack.c.l.b16 %v636
    %v676 = vunpack.c.l.b16 %v637
    %v677 = vunpack.c.l.b16 %v638
    %v678 = vunpack.c.l.b16 %v639
    %v679 = vunpack.c.l.b16 %v640
    %v680 = vunpack.c.l.b16 %v641
    %v681 = vunpack.c.l.b16 %v642
    %v682 = vunpack.c.l.b16 %v643
    %v683 = vunpack.c.l.b16 %v644
    %v684 = vunpack.c.l.b16 %v645
    %v685 = vpack.c.b16 %v670, %v669
    %v686 = vpack.c.b16 %v672, %v671
    %v687 = vpack.c.b16 %v674, %v673
    %v688 = vpack.c.b16 %v676, %v675
    %v689 = vpack.c.b16 %v678, %v677
    %v690 = vpack.c.b16 %v680, %v679
    %v691 = vpack.c.b16 %v682, %v681
    %v692 = vpack.c.b16 %v684, %v683
    %701 = vmatprep.subr.bf16.mxu0 0
    %702 = vmatpush1.bf16.msra.mxu0 %v685
    %703 = vmatprep.subr.bf16.mxu0 0
    %704 = vmatpush1.bf16.msra.mxu0 %v686
    %705 = vmatprep.subr.bf16.mxu0 0
    %706 = vmatpush1.bf16.msra.mxu0 %v687
    %707 = vmatprep.subr.bf16.mxu0 0
    %708 = vmatpush1.bf16.msra.mxu0 %v688
    %709 = vmatprep.subr.bf16.mxu0 0
    %710 = vmatpush1.bf16.msra.mxu0 %v689
    %711 = vmatprep.subr.bf16.mxu0 0
    %712 = vmatpush1.bf16.msra.mxu0 %v690
    %713 = vmatprep.subr.bf16.mxu0 0
    %714 = vmatpush1.bf16.msra.mxu0 %v691
    %715 = vmatprep.subr.bf16.mxu0 0
    %716 = vmatpush1.bf16.msra.mxu0 %v692
    %717 = vmatprep.subr.bf16.mxu0 0
    %718 = vmatpush1.bf16.msra.mxu0 0
    %719 = vmatprep.subr.bf16.mxu0 0
    %720 = vmatpush1.bf16.msra.mxu0 0
    %721 = vmatprep.subr.bf16.mxu0 0
    %722 = vmatpush1.bf16.msra.mxu0 0
    %723 = vmatprep.subr.bf16.mxu0 0
    %724 = vmatpush1.bf16.msra.mxu0 0
    %725 = vmatprep.subr.bf16.mxu0 0
    %726 = vmatpush1.bf16.msra.mxu0 0
    %727 = vmatprep.subr.bf16.mxu0 0
    %728 = vmatpush1.bf16.msra.mxu0 0
    %729 = vmatprep.subr.bf16.mxu0 0
    %730 = vmatpush1.bf16.msra.mxu0 0
    %731 = vmatprep.subr.bf16.mxu0 0
    %732 = vmatpush1.bf16.msra.mxu0 0
    %733 = vmatprep.mubr.bf16.mxu0 0
    %734 = vmatmul.mubr.bf16.gmra.mrb[0].mxu0 %v629
    %v735 = vpop.f32.mrb[0].mxu0
    %v736 = vadd.f32 %v651, %v735
    %v737 = vpop.f32.mrb[0].mxu0
    %v738 = vpop.f32.mrb[0].mxu0
    %v739 = vpop.f32.mrb[0].mxu0
    %740 = vdwg.mxu0
    %v741 = vmax.f32 %v736, 0.0
    %v742 = vpack.c.bf16 %v741, %v741
    %v743 = vld [vmem:[#allocation13] sm:$0xf]
    %v744 = vld [vmem:[#allocation13 + $0x4] sm:$0xf]
    %v745 = vld [vmem:[#allocation13 + $0x8] sm:$0xf]
    %v746 = vld [vmem:[#allocation13 + $0xc] sm:$0xf]
    %v747 = vld [vmem:[#allocation13 + $0x10] sm:$0xf]
    %v748 = vld [vmem:[#allocation13 + $0x14] sm:$0xf]
    %v749 = vld [vmem:[#allocation13 + $0x18] sm:$0xf]
    %v750 = vld [vmem:[#allocation13 + $0x1c] sm:$0xf]
    %v751 = vld [vmem:[#allocation13 + $0x20] sm:$0xf]
    %v752 = vld [vmem:[#allocation13 + $0x24] sm:$0xf]
    %v753 = vld [vmem:[#allocation13 + $0x28] sm:$0xf]
    %v754 = vld [vmem:[#allocation13 + $0x2c] sm:$0xf]
    %v755 = vld [vmem:[#allocation13 + $0x30] sm:$0xf]
    %v756 = vld [vmem:[#allocation13 + $0x34] sm:$0xf]
    %v757 = vld [vmem:[#allocation13 + $0x38] sm:$0xf]
    %v758 = vld [vmem:[#allocation13 + $0x3c] sm:$0xf]
    %v759 = vld [vmem:[%s12] sm:$0x1]
    %v761 = vlaneseq
    %v762 = vshrl.u32 %v761, 7
    %v763 = vsub.s32 0, %v762
    %v764 = vrot.slane %v759, %v763
    %v782 = vunpack.c.l.b16 %v743
    %v783 = vunpack.c.l.b16 %v744
    %v784 = vunpack.c.l.b16 %v745
    %v785 = vunpack.c.l.b16 %v746
    %v786 = vunpack.c.l.b16 %v747
    %v787 = vunpack.c.l.b16 %v748
    %v788 = vunpack.c.l.b16 %v749
    %v789 = vunpack.c.l.b16 %v750
    %v790 = vunpack.c.l.b16 %v751
    %v791 = vunpack.c.l.b16 %v752
    %v792 = vunpack.c.l.b16 %v753
    %v793 = vunpack.c.l.b16 %v754
    %v794 = vunpack.c.l.b16 %v755
    %v795 = vunpack.c.l.b16 %v756
    %v796 = vunpack.c.l.b16 %v757
    %v797 = vunpack.c.l.b16 %v758
    %v798 = vpack.c.b16 %v783, %v782
    %v799 = vpack.c.b16 %v785, %v784
    %v800 = vpack.c.b16 %v787, %v786
    %v801 = vpack.c.b16 %v789, %v788
    %v802 = vpack.c.b16 %v791, %v790
    %v803 = vpack.c.b16 %v793, %v792
    %v804 = vpack.c.b16 %v795, %v794
    %v805 = vpack.c.b16 %v797, %v796
    %814 = vmatprep.subr.bf16.mxu0 0
    %815 = vmatpush1.bf16.msra.mxu0 %v798
    %816 = vmatprep.subr.bf16.mxu0 0
    %817 = vmatpush1.bf16.msra.mxu0 %v799
    %818 = vmatprep.subr.bf16.mxu0 0
    %819 = vmatpush1.bf16.msra.mxu0 %v800
    %820 = vmatprep.subr.bf16.mxu0 0
    %821 = vmatpush1.bf16.msra.mxu0 %v801
    %822 = vmatprep.subr.bf16.mxu0 0
    %823 = vmatpush1.bf16.msra.mxu0 %v802
    %824 = vmatprep.subr.bf16.mxu0 0
    %825 = vmatpush1.bf16.msra.mxu0 %v803
    %826 = vmatprep.subr.bf16.mxu0 0
    %827 = vmatpush1.bf16.msra.mxu0 %v804
    %828 = vmatprep.subr.bf16.mxu0 0
    %829 = vmatpush1.bf16.msra.mxu0 %v805
    %830 = vmatprep.subr.bf16.mxu0 0
    %831 = vmatpush1.bf16.msra.mxu0 0
    %832 = vmatprep.subr.bf16.mxu0 0
    %833 = vmatpush1.bf16.msra.mxu0 0
    %834 = vmatprep.subr.bf16.mxu0 0
    %835 = vmatpush1.bf16.msra.mxu0 0
    %836 = vmatprep.subr.bf16.mxu0 0
    %837 = vmatpush1.bf16.msra.mxu0 0
    %838 = vmatprep.subr.bf16.mxu0 0
    %839 = vmatpush1.bf16.msra.mxu0 0
    %840 = vmatprep.subr.bf16.mxu0 0
    %841 = vmatpush1.bf16.msra.mxu0 0
    %842 = vmatprep.subr.bf16.mxu0 0
    %843 = vmatpush1.bf16.msra.mxu0 0
    %844 = vmatprep.subr.bf16.mxu0 0
    %845 = vmatpush1.bf16.msra.mxu0 0
    %846 = vmatprep.mubr.bf16.mxu0 0
    %847 = vmatmul.mubr.bf16.gmra.mrb[0].mxu0 %v742
    %v848 = vpop.f32.mrb[0].mxu0
    %v849 = vadd.f32 %v764, %v848
    %v850 = vpop.f32.mrb[0].mxu0
    %v851 = vpop.f32.mrb[0].mxu0
    %v852 = vpop.f32.mrb[0].mxu0
    %853 = vdwg.mxu0
    %854 = vst [vmem:[#allocation14] sm:$0x3] %v849
    // Predicated region
    $region82: #{tpu_custom_call.1} parent=1 // pred_check
      _
    $region83: #{tpu_custom_call.1} parent=1 // pred_check_branch
      %856 = sbr.rel (0) target = $region85
    $region84: #{tpu_custom_call.1} parent=1 // pred_region
      %s858 = ssub.s32 32, 32
      %859 = vsyncadd [#allocation4], %s858
      %s861 = sshll.u32 [#allocation14], 4
      %s862 = int_to_ptr.vmem [resolvable:$true] %s861
      %864 = dma.vmem_to_hbm [thread:$0]  %s862, 32, %s13, [#allocation4]
    $region85: #{tpu_custom_call.1} parent=1 // pred_fallthru
      _
    // Predicated region
    $region86: #{tpu_custom_call.1} parent=1 // pred_check
      _
    $region87: #{tpu_custom_call.1} parent=1 // pred_check_branch
      %866 = sbr.rel (0) target = $region89
    $region88: #{tpu_custom_call.1} parent=1 // pred_region
      %867 = dma.done [#allocation4], 32
    $region89: #{tpu_custom_call.1} parent=1 // pred_fallthru
      _
    %868 = vsyncpa [#allocation3], 1
    %869 = vsyncpa [#allocation6], 1
    %870 = vsyncpa [#allocation9], 1
    %871 = vsyncpa [#allocation12], 1
    %872 = vsyncpa [#allocation4], 1

</llo_original>
